<compile_context>
chip_gen: v6e
topology: v6e:2x2x1
jax: 0.10.0
libtpu: 0.0.40
codegen_flags: <defaults>
</compile_context>

<pallas_src>
import jax
import jax.numpy as jnp
from jax.experimental import pallas as pl
from jax.experimental.pallas import tpu as pltpu

C_IN, C_OUT = 3, 64
KH = KW = 3
K_RAW = C_IN * KH * KW          # 27 real contraction depth
K_PAD = 32                      # 27 taps + 1 bias row + 4 zero rows
FOLD = 4                        # rows folded into one 128-lane vector
K_BIG = FOLD * K_PAD            # 128  (GEMM contraction depth)
N_BIG = FOLD * C_OUT            # 256  (GEMM output width)


def conv_gemm_kernel(p_ref, w_ref, o_ref):
    # p_ref: (tile, 128)  four im2col rows folded along lanes
    # w_ref: (128, 256)   block-diagonal packed filter+bias, resident across steps
    # o_ref: (tile, 256)  four output rows folded along lanes (unmasked stores)
    o_ref[...] = jnp.dot(p_ref[...], w_ref[...],
                         preferred_element_type=jnp.float32).astype(o_ref.dtype)


def _im2col(x_nchw, h_out, w_out, dtype):
    """NCHW -> [M, K_PAD] patch matrix with the bias ones-column and zero pad
    columns built directly inside the concatenate (single HBM materialization)."""
    x = jnp.transpose(x_nchw, (0, 2, 3, 1)).astype(dtype)        # [N, H, W, Cin]
    n = x.shape[0]
    cols = [x[:, kh:kh + h_out, kw:kw + w_out, :]                # each [N,Ho,Wo,Cin]
            for kh in range(KH) for kw in range(KW)]
    ones = jnp.ones((n, h_out, w_out, 1), dtype)                 # bias column
    zeros = jnp.zeros((n, h_out, w_out, K_PAD - K_RAW - 1), dtype)
    patches = jnp.concatenate(cols + [ones, zeros], axis=-1)     # [N, Ho, Wo, 32]
    return patches.reshape(-1, K_PAD)                            # [M, 32]


def _pack_weight(weight_oihw, bias, dtype):
    """[Cout, Cin, KH, KW] + [Cout] -> block-diag [128, 256] matching the fold."""
    # Column order of patches is (kh, kw, cin); match it.
    w_mat = jnp.transpose(weight_oihw, (2, 3, 1, 0)).reshape(K_RAW, C_OUT)
    w_pad = (jnp.zeros((K_PAD, C_OUT), dtype)
             .at[:K_RAW].set(w_mat.astype(dtype))
             .at[K_RAW].set(bias.astype(dtype)))                 # [32, 64]
    w_big = jnp.zeros((K_BIG, N_BIG), dtype)
    for j in range(FOLD):                                        # tiny, trace-time loop
        w_big = w_big.at[j * K_PAD:(j + 1) * K_PAD,
                         j * C_OUT:(j + 1) * C_OUT].set(w_pad)
    return w_big                                                 # [128, 256]


def conv2d_pallas(x_nchw, weight_oihw, bias, m_fold_tile=2048, compute_dtype=None):
    """x_nchw: [N, 3, H, W]; weight_oihw: [64, 3, 3, 3]; bias: [64] -> [N, 64, Ho, Wo]."""
    n, c_in, h, w = x_nchw.shape
    assert c_in == C_IN
    h_out, w_out = h - KH + 1, w - KW + 1
    m = n * h_out * w_out
    out_dtype = x_nchw.dtype
    if compute_dtype is None:
        compute_dtype = out_dtype        # set jnp.bfloat16 to halve DMA bytes (v5e win)

    # --- wrapper glue (plain XLA): im2col + weight/bias packing ---
    patches = _im2col(x_nchw, h_out, w_out, compute_dtype)        # [M, 32]
    w_big = _pack_weight(weight_oihw, bias, compute_dtype)        # [128, 256]

    # --- tile sizing: big lane-dense blocks, even grid extent for megacore ---
    m_fold_needed = pl.cdiv(m, FOLD)
    tile = min(int(m_fold_tile), ((m_fold_needed + 7) // 8) * 8)
    tile = max(8, ((tile + 7) // 8) * 8)                          # sublane multiple
    num_steps = pl.cdiv(m_fold_needed, tile)
    if num_steps % 2:
        num_steps += 1
    m_pad = num_steps * tile * FOLD

    patches = jnp.pad(patches, ((0, m_pad - m), (0, 0)))          # zero rows -> zero out
    p_fold = patches.reshape(m_pad // FOLD, K_BIG)                # [M/4, 128] free view

    # VMEM budget: 2 bufs * tile * (128 + 256) * itemsize + 2 * 128*256*itemsize
    itemsize = jnp.dtype(compute_dtype).itemsize
    vmem_need = 2 * tile * (K_BIG + N_BIG) * max(itemsize, 4) + 2 * K_BIG * N_BIG * 4
    vmem_limit = min(max(vmem_need * 2, 16 * 1024 * 1024), 32 * 1024 * 1024)

    out_fold = pl.pallas_call(
        conv_gemm_kernel,
        out_shape=jax.ShapeDtypeStruct((m_pad // FOLD, N_BIG), out_dtype),
        grid_spec=pltpu.PrefetchScalarGridSpec(
            num_scalar_prefetch=0,
            grid=(num_steps,),
            in_specs=[
                pl.BlockSpec((tile, K_BIG), lambda i: (i, 0)),
                pl.BlockSpec((K_BIG, N_BIG), lambda i: (0, 0)),   # weight stays resident
            ],
            out_specs=pl.BlockSpec((tile, N_BIG), lambda i: (i, 0)),
        ),
        compiler_params=pltpu.CompilerParams(
            dimension_semantics=("parallel",),
            vmem_limit_bytes=int(vmem_limit)),
    )(p_fold, w_big)

    # Un-fold (free row-major view), drop padding, back to PyTorch's NCHW.
    out_flat = out_fold.reshape(m_pad, C_OUT)[:m]                 # [M, 64]
    out = out_flat.reshape(n, h_out, w_out, C_OUT)
    # TODO(synk): if the consumer can take NHWC, skip this transpose (full
    # extra output-sized HBM round-trip in XLA).
    return jnp.transpose(out, (0, 3, 1, 2)).astype(out_dtype)     # [N, 64, Ho, Wo]


def init_params(key):
    """Deterministic Conv2d(3, 64, 3) params (PyTorch-style uniform init)."""
    kw_key, kb_key = jax.random.split(key)
    fan_in = C_IN * KH * KW
    bound = 1.0 / jnp.sqrt(fan_in)
    weight = jax.random.uniform(kw_key, (C_OUT, C_IN, KH, KW),
                                dtype=jnp.float32, minval=-bound, maxval=bound)
    bias = jax.random.uniform(kb_key, (C_OUT,),
                              dtype=jnp.float32, minval=-bound, maxval=bound)
    return weight, bias


if __name__ == "__main__":
    key = jax.random.PRNGKey(0)
    k_x, k_p = jax.random.split(key)

    # Small NCHW input consistent with Conv2d(3, 64, 3): [N=2, C=3, H=16, W=16]
    x = jax.random.normal(k_x, (2, 3, 16, 16), dtype=jnp.float32)
    weight, bias = init_params(k_p)

    out = conv2d_pallas(x, weight, bias)
    out = jax.block_until_ready(out)
    assert out.shape == (2, 64, 14, 14), out.shape

    # Cross-check against the XLA reference convolution.
    ref = jax.lax.conv_general_dilated(
        x, weight, window_strides=(1, 1), padding="VALID",
        dimension_numbers=("NCHW", "OIHW", "NCHW")) + bias[None, :, None, None]
    assert jnp.allclose(out, ref, atol=1e-4, rtol=1e-4)

    print("KERNEL_OK")
</pallas_src>

<mosaic_0001>
module attributes {stable_mosaic.version = 11 : i64} {
  func.func @conv_gemm_kernel(%arg0: i32, %arg1: memref<104x128xf32, #tpu.memory_space<vmem>>, %arg2: memref<128x256xf32, #tpu.memory_space<vmem>>, %arg3: memref<104x256xf32, #tpu.memory_space<vmem>>) attributes {dimension_semantics = [#tpu.dimension_semantics<parallel>], iteration_bounds = array<i64: 2>, scalar_prefetch = 0 : i64, scratch_operands = 0 : i64, tpu.core_type = #tpu.core_type<tc>, window_params = [{transform_indices = @transform_0, window_bounds = array<i64: 104, 128>}, {pipeline_mode = #tpu.pipeline_mode<synchronous>, transform_indices = @transform_1, window_bounds = array<i64: 128, 256>}, {transform_indices = @transform_2, window_bounds = array<i64: 104, 256>}]} {
    %c0 = arith.constant 0 : index
    %c0_0 = arith.constant 0 : index
    %0 = vector.load %arg1[%c0, %c0_0] : memref<104x128xf32, #tpu.memory_space<vmem>>, vector<104x128xf32>
    %c0_1 = arith.constant 0 : index
    %c0_2 = arith.constant 0 : index
    %1 = vector.load %arg2[%c0_1, %c0_2] : memref<128x256xf32, #tpu.memory_space<vmem>>, vector<128x256xf32>
    %cst = arith.constant dense<0.000000e+00> : vector<104x256xf32>
    %2 = tpu.matmul %0, %1, %cst {dimension_numbers = #tpu.dot_dimension_numbers<[1], [0], [0], [1], [0, 0, 1, 1], [], []>} : vector<104x128xf32>, vector<128x256xf32>, vector<104x256xf32> -> vector<104x256xf32>
    %c0_3 = arith.constant 0 : index
    %c0_4 = arith.constant 0 : index
    %3 = vector.load %arg3[%c0_3, %c0_4] : memref<104x256xf32, #tpu.memory_space<vmem>>, vector<104x256xf32>
    tpu.vector_store %arg3[%c0_3, %c0_4], %2 {strides = array<i32>} : memref<104x256xf32, #tpu.memory_space<vmem>>, vector<104x256xf32>,
    return
  }
  func.func @transform_0(%arg0: i32) -> (i32, i32) {
    %c0_i32 = arith.constant 0 : i32
    %c0_i32_0 = arith.constant 0 : i32
    return %arg0, %c0_i32 : i32, i32
  }
  func.func @transform_1(%arg0: i32) -> (i32, i32) {
    %c0_i32 = arith.constant 0 : i32
    %c0_i32_0 = arith.constant 0 : i32
    %c0_i32_1 = arith.constant 0 : i32
    return %c0_i32, %c0_i32_0 : i32, i32
  }
  func.func @transform_2(%arg0: i32) -> (i32, i32) {
    %c0_i32 = arith.constant 0 : i32
    %c0_i32_0 = arith.constant 0 : i32
    return %arg0, %c0_i32 : i32, i32
  }
}

</mosaic_0001>

<llo_original>
// kernel: tpu_custom_call.1
$region0: #{tpu_custom_call.1}
  #allocation0 [shape = 'u32[]', space=smem, size = 0x4, offset = 0x4, fixed_abs, tag = 'smem constant byte address 0x4 - core index']
  #allocation1 [shape = 'u32[144,128]{1,0:T(1,128)}', space=vmem, size = 0x12000, scoped, tag = 'internal scratch']
  %s0 = inlined_call_operand.hbm [shape: f32[208,128], index: 0, kind: input, shape index: {}]
  %s1 = inlined_call_operand.hbm [shape: f32[128,256], index: 1, kind: input, shape index: {}]
  %s2 = inlined_call_operand.hbm [shape: f32[208,256], index: 2, kind: output, shape index: {}]
  %s3 = sld [smem:[#allocation0]]
  $region49: #{tpu_custom_call.1} parent=0
    _
  %s5 = ssub.s32 1, %s3
  %s6 = scalar_select 0, %s5, %s3
  $region1: #{tpu_custom_call.1} parent=0
    #allocation2 [shape = 'u8[106496]{0}', space=vmem, size = 0x1a000, scoped, tag = 'input window, operand 0']
    #allocation3 [shape = 's32[2]{0}', space=sflag, size = 0x8, scoped, tag = 'scoped memory for tpu_custom_call.1']
    #allocation4 [shape = 's32[2]{0}', space=sflag, size = 0x8, scoped, tag = 'scoped memory for tpu_custom_call.1']
    #allocation5 [shape = 'u8[131072]{0}', space=vmem, size = 0x20000, scoped, tag = 'input window, operand 1, single buffered']
    #allocation6 [shape = 's32[1]{0}', space=sflag, size = 0x4, scoped, tag = 'scoped memory for tpu_custom_call.1']
    #allocation7 [shape = 'u8[212992]{0}', space=vmem, size = 0x34000, scoped, tag = 'output window, operand 0']
    %7 = vsyncpa [#allocation3], 0
    %s8 = scalar_lea.sflag [#allocation3], 1
    %9 = vsyncpa %s8, 0
    %10 = vsyncpa [#allocation6], 0
    %11 = vsyncpa [#allocation4], 0
    %s12 = scalar_lea.sflag [#allocation4], 1
    %13 = vsyncpa %s12, 0
    loop: start=0, step=1, limit=4
    $region2: #{tpu_custom_call.1} parent=1 // loop_pre_header
      _
    $region3: #{tpu_custom_call.1} parent=1 // loop_header
      %s15 = sphi 0, %s19
      %p16 = scmp.ge.s32.totalorder %s15, 4
      %s25 = sphi 0, %s27
      %s28 = sphi 0, %s25
      %s29 = sphi 0, %s28
      %s45 = sphi 0, %s29
      %s49 = sphi 0, %s49
      %s51 = sphi 0, %s49
      %s52 = sphi 0, %s51
      %s66 = sphi 0, %s52
      %s72 = sphi 0, %s74
      %s75 = sphi 0, %s72
      %s76 = sphi 0, %s75
      %s92 = sphi 0, %s76
    $region4: #{tpu_custom_call.1} parent=1 // loop_header_branch
      %18 = sbr.rel (%p16) target = $region8
    $region5: #{tpu_custom_call.1} parent=1 // loop_body
      %s20 = ssub.s32 %s15, 1
      %s21 = ssub.s32 %s15, 2
      %s22 = sadd.s32 %s15, 1
      %s23 = ssub.s32 %s15, %s22
      %p24 = scmp.eq.s32.totalorder %s23, 0
      %s26 = sadd.s32 %s25, 1
      %s27 = scalar_select %p24, %s25, %s26
      %p30 = pneg %p24
      %p31 = scmp.eq.s32.totalorder %s15, 1
      %p32 = por %p30, %p31
      %p33 = scmp.ne.s32.totalorder %s25, %s28
      %p34 = scmp.eq.s32.totalorder %s15, 0
      %p35 = por %p33, %p34
      %p36 = scmp.ne.s32.totalorder %s25, %s28
      %p37 = scmp.eq.s32.totalorder %s20, 1
      %p38 = por %p36, %p37
      %p39 = scmp.ne.s32.totalorder %s28, %s29
      %p40 = scmp.eq.s32.totalorder %s20, 0
      %p41 = por %p39, %p40
      %p42 = scmp.ne.s32.totalorder %s28, %s29
      %p43 = scmp.eq.s32.totalorder %s21, 1
      %p44 = por %p42, %p43
      %p46 = scmp.ne.s32.totalorder %s29, %s45
      %p47 = scmp.eq.s32.totalorder %s21, 0
      %p48 = por %p46, %p47
      %s50 = sadd.s32 %s49, 1
      %p53 = scmp.eq.s32.totalorder %s15, 1
      %p54 = scmp.ne.s32.totalorder %s49, %s51
      %p55 = scmp.eq.s32.totalorder %s15, 0
      %p56 = por %p54, %p55
      %p57 = scmp.ne.s32.totalorder %s49, %s51
      %p58 = scmp.eq.s32.totalorder %s20, 1
      %p59 = por %p57, %p58
      %p60 = scmp.ne.s32.totalorder %s51, %s52
      %p61 = scmp.eq.s32.totalorder %s20, 0
      %p62 = por %p60, %p61
      %p63 = scmp.ne.s32.totalorder %s51, %s52
      %p64 = scmp.eq.s32.totalorder %s21, 1
      %p65 = por %p63, %p64
      %p67 = scmp.ne.s32.totalorder %s52, %s66
      %p68 = scmp.eq.s32.totalorder %s21, 0
      %p69 = por %p67, %p68
      %s70 = ssub.s32 %s15, %s22
      %p71 = scmp.eq.s32.totalorder %s70, 0
      %s73 = sadd.s32 %s72, 1
      %s74 = scalar_select %p71, %s72, %s73
      %p77 = pneg %p71
      %p78 = scmp.eq.s32.totalorder %s15, 1
      %p79 = por %p77, %p78
      %p80 = scmp.ne.s32.totalorder %s72, %s75
      %p81 = scmp.eq.s32.totalorder %s15, 0
      %p82 = por %p80, %p81
      %p83 = scmp.ne.s32.totalorder %s72, %s75
      %p84 = scmp.eq.s32.totalorder %s20, 1
      %p85 = por %p83, %p84
      %p86 = scmp.ne.s32.totalorder %s75, %s76
      %p87 = scmp.eq.s32.totalorder %s20, 0
      %p88 = por %p86, %p87
      %p89 = scmp.ne.s32.totalorder %s75, %s76
      %p90 = scmp.eq.s32.totalorder %s21, 1
      %p91 = por %p89, %p90
      %p93 = scmp.ne.s32.totalorder %s76, %s92
      %p94 = scmp.eq.s32.totalorder %s21, 0
      %p95 = por %p93, %p94
      %p96 = scmp.le.s32.totalorder 1, %s15
      %p97 = scmp.lt.s32.totalorder %s15, 3
      %p98 = pnand %p96, %p97
      %p99 = pneg %p98
      // Predicated region
      $region9: #{tpu_custom_call.1} parent=5 // pred_check
        _
      $region10: #{tpu_custom_call.1} parent=5 // pred_check_branch
        %101 = sbr.rel (%p98) target = $region12
      $region11: #{tpu_custom_call.1} parent=5 // pred_region
        %s102 = ssub.s32 %s15, 1
        // Predicated region
        $region13: #{tpu_custom_call.1} parent=11 // pred_check
          %p103 = pneg %p62
        $region14: #{tpu_custom_call.1} parent=11 // pred_check_branch
          %105 = sbr.rel (%p103) target = $region16
        $region15: #{tpu_custom_call.1} parent=11 // pred_region
          %s107 = ssub.s32 4096, 4096
          %108 = vsyncadd [#allocation6], %s107
          %s109 = sshll.u32 [#allocation5], 4
          %s110 = int_to_ptr.vmem [resolvable:$true] %s109
          %115 = dma.hbm_to_vmem [thread:$0]  %s1, 4096, %s110, [#allocation6], 256, 256, 16
        $region16: #{tpu_custom_call.1} parent=11 // pred_fallthru
          _
      $region12: #{tpu_custom_call.1} parent=5 // pred_fallthru
        _
      %p116 = scmp.lt.s32.totalorder %s15, 2
      // Predicated region
      $region17: #{tpu_custom_call.1} parent=5 // pred_check
        %p117 = pneg %p116
      $region18: #{tpu_custom_call.1} parent=5 // pred_check_branch
        %119 = sbr.rel (%p117) target = $region20
      $region19: #{tpu_custom_call.1} parent=5 // pred_region
        // Predicated region
        $region21: #{tpu_custom_call.1} parent=19 // pred_check
          %p120 = pneg %p35
        $region22: #{tpu_custom_call.1} parent=19 // pred_check_branch
          %122 = sbr.rel (%p120) target = $region24
        $region23: #{tpu_custom_call.1} parent=19 // pred_region
          %s123 = sand.u32 %s25, 1
          %s124 = scalar_lea.sflag [#allocation3], %s123
          %s125 = sand.u32 %s25, 1
          %s126 = smul.addr %s125, 104
          %s127 = scalar_lea.vmem [#allocation2], %s126
          %s128 = smul.u32 13, %s15
          %s130 = ssub.s32 1664, 1664
          %131 = vsyncadd %s124, %s130
          %s132 = smul.addr %s128, 128
          %s133 = scalar_lea.hbm %s0, %s132
          %s134 = sshll.u32 %s127, 4
          %s135 = int_to_ptr.vmem [resolvable:$true] %s134
          %140 = dma.hbm_to_vmem [thread:$0]  %s133, 1664, %s135, %s124, 128, 128, 8
        $region24: #{tpu_custom_call.1} parent=19 // pred_fallthru
          _
      $region20: #{tpu_custom_call.1} parent=5 // pred_fallthru
        _
      %p141 = scmp.le.s32.totalorder 1, %s15
      %p142 = scmp.lt.s32.totalorder %s15, 3
      %p143 = pnand %p141, %p142
      %p144 = pneg %p143
      // Predicated region
      $region25: #{tpu_custom_call.1} parent=5 // pred_check
        _
      $region26: #{tpu_custom_call.1} parent=5 // pred_check_branch
        %146 = sbr.rel (%p143) target = $region28
      $region27: #{tpu_custom_call.1} parent=5 // pred_region
        %s147 = ssub.s32 %s15, 1
        %s148 = sand.u32 %s28, 1
        %s149 = scalar_lea.sflag [#allocation3], %s148
        %s150 = sand.u32 %s28, 1
        %s151 = smul.addr %s150, 104
        %s152 = scalar_lea.vmem [#allocation2], %s151
        // Predicated region
        $region29: #{tpu_custom_call.1} parent=27 // pred_check
          %p153 = pneg %p41
        $region30: #{tpu_custom_call.1} parent=27 // pred_check_branch
          %155 = sbr.rel (%p153) target = $region32
        $region31: #{tpu_custom_call.1} parent=27 // pred_region
          %156 = dma.done %s149, 1664
        $region32: #{tpu_custom_call.1} parent=27 // pred_fallthru
          _
        // Predicated region
        $region33: #{tpu_custom_call.1} parent=27 // pred_check
          %p157 = pneg %p62
        $region34: #{tpu_custom_call.1} parent=27 // pred_check_branch
          %159 = sbr.rel (%p157) target = $region36
        $region35: #{tpu_custom_call.1} parent=27 // pred_region
          %160 = dma.done [#allocation6], 4096
        $region36: #{tpu_custom_call.1} parent=27 // pred_fallthru
          _
        %s161 = sand.u32 %s28, 1
        %s162 = scalar_lea.sflag [#allocation3], %s161
        %s163 = sand.u32 %s28, 1
        %s164 = smul.addr %s163, 104
        %s165 = scalar_lea.vmem [#allocation2], %s164
        %p166 = pneg %p41
        %p167 = pneg %p38
        %p168 = pneg %p62
        %p169 = pneg %p59
        %p170 = pneg %p88
        %p171 = pneg %p85
        %s172 = sand.u32 %s75, 1
        %s173 = scalar_lea.sflag [#allocation4], %s172
        %s174 = sand.u32 %s75, 1
        %s175 = smul.addr %s174, 208
        %s176 = scalar_lea.vmem [#allocation7], %s175
        %s177 = smul.u32 13, %s20
        %s178 = smul.u32 13, %s20
        %v179 = vld [vmem:[%s152] sm:$0xff]
        %v180 = vld [vmem:[%s152 + $0x8] sm:$0xff]
        %v181 = vld [vmem:[%s152 + $0x10] sm:$0xff]
        %v182 = vld [vmem:[%s152 + $0x18] sm:$0xff]
        %v183 = vld [vmem:[%s152 + $0x20] sm:$0xff]
        %v184 = vld [vmem:[%s152 + $0x28] sm:$0xff]
        %v185 = vld [vmem:[%s152 + $0x30] sm:$0xff]
        %v186 = vld [vmem:[%s152 + $0x38] sm:$0xff]
        %v187 = vld [vmem:[%s152 + $0x40] sm:$0xff]
        %v188 = vld [vmem:[%s152 + $0x48] sm:$0xff]
        %v189 = vld [vmem:[%s152 + $0x50] sm:$0xff]
        %v190 = vld [vmem:[%s152 + $0x58] sm:$0xff]
        %v191 = vld [vmem:[%s152 + $0x60] sm:$0xff]
        %v192 = vld [vmem:[#allocation5] sm:$0xff]
        %v193 = vld [vmem:[#allocation5 + $0x8] sm:$0xff]
        %v194 = vld [vmem:[#allocation5 + $0x10] sm:$0xff]
        %v195 = vld [vmem:[#allocation5 + $0x18] sm:$0xff]
        %v196 = vld [vmem:[#allocation5 + $0x20] sm:$0xff]
        %v197 = vld [vmem:[#allocation5 + $0x28] sm:$0xff]
        %v198 = vld [vmem:[#allocation5 + $0x30] sm:$0xff]
        %v199 = vld [vmem:[#allocation5 + $0x38] sm:$0xff]
        %v200 = vld [vmem:[#allocation5 + $0x40] sm:$0xff]
        %v201 = vld [vmem:[#allocation5 + $0x48] sm:$0xff]
        %v202 = vld [vmem:[#allocation5 + $0x50] sm:$0xff]
        %v203 = vld [vmem:[#allocation5 + $0x58] sm:$0xff]
        %v204 = vld [vmem:[#allocation5 + $0x60] sm:$0xff]
        %v205 = vld [vmem:[#allocation5 + $0x68] sm:$0xff]
        %v206 = vld [vmem:[#allocation5 + $0x70] sm:$0xff]
        %v207 = vld [vmem:[#allocation5 + $0x78] sm:$0xff]
        %v208 = vld [vmem:[#allocation5 + $0x80] sm:$0xff]
        %v209 = vld [vmem:[#allocation5 + $0x88] sm:$0xff]
        %v210 = vld [vmem:[#allocation5 + $0x90] sm:$0xff]
        %v211 = vld [vmem:[#allocation5 + $0x98] sm:$0xff]
        %v212 = vld [vmem:[#allocation5 + $0xa0] sm:$0xff]
        %v213 = vld [vmem:[#allocation5 + $0xa8] sm:$0xff]
        %v214 = vld [vmem:[#allocation5 + $0xb0] sm:$0xff]
        %v215 = vld [vmem:[#allocation5 + $0xb8] sm:$0xff]
        %v216 = vld [vmem:[#allocation5 + $0xc0] sm:$0xff]
        %v217 = vld [vmem:[#allocation5 + $0xc8] sm:$0xff]
        %v218 = vld [vmem:[#allocation5 + $0xd0] sm:$0xff]
        %v219 = vld [vmem:[#allocation5 + $0xd8] sm:$0xff]
        %v220 = vld [vmem:[#allocation5 + $0xe0] sm:$0xff]
        %v221 = vld [vmem:[#allocation5 + $0xe8] sm:$0xff]
        %v222 = vld [vmem:[#allocation5 + $0xf0] sm:$0xff]
        %v223 = vld [vmem:[#allocation5 + $0xf8] sm:$0xff]
        %224 = vmatprep.subr.mxu0 %v223
        %225 = vmatpush1.msra.mxu0 %v222
        %226 = vmatprep.subr.mxu0 %v221
        %227 = vmatpush1.msra.mxu0 %v220
        %228 = vmatprep.subr.mxu0 %v219
        %229 = vmatpush1.msra.mxu0 %v218
        %230 = vmatprep.subr.mxu0 %v217
        %231 = vmatpush1.msra.mxu0 %v216
        %232 = vmatprep.subr.mxu0 %v215
        %233 = vmatpush1.msra.mxu0 %v214
        %234 = vmatprep.subr.mxu0 %v213
        %235 = vmatpush1.msra.mxu0 %v212
        %236 = vmatprep.subr.mxu0 %v211
        %237 = vmatpush1.msra.mxu0 %v210
        %238 = vmatprep.subr.mxu0 %v209
        %239 = vmatpush1.msra.mxu0 %v208
        %240 = vmatprep.subr.mxu0 %v207
        %241 = vmatpush1.msra.mxu0 %v206
        %242 = vmatprep.subr.mxu0 %v205
        %243 = vmatpush1.msra.mxu0 %v204
        %244 = vmatprep.subr.mxu0 %v203
        %245 = vmatpush1.msra.mxu0 %v202
        %246 = vmatprep.subr.mxu0 %v201
        %247 = vmatpush1.msra.mxu0 %v200
        %248 = vmatprep.subr.mxu0 %v199
        %249 = vmatpush1.msra.mxu0 %v198
        %250 = vmatprep.subr.mxu0 %v197
        %251 = vmatpush1.msra.mxu0 %v196
        %252 = vmatprep.subr.mxu0 %v195
        %253 = vmatpush1.msra.mxu0 %v194
        %254 = vmatprep.subr.mxu0 %v193
        %255 = vmatpush1.msra.mxu0 %v192
        %256 = vmatprep.subr.mxu0 0.0
        %257 = vmatpush2.msra.mxu0 0.0
        %258 = vmatprep.subr.mxu0 0.0
        %259 = vmatpush2.msra.mxu0 0.0
        %260 = vmatprep.subr.mxu0 0.0
        %261 = vmatpush2.msra.mxu0 0.0
        %262 = vmatprep.subr.mxu0 0.0
        %263 = vmatpush2.msra.mxu0 0.0
        %264 = vmatprep.subr.mxu0 0.0
        %265 = vmatpush2.msra.mxu0 0.0
        %266 = vmatprep.subr.mxu0 0.0
        %267 = vmatpush2.msra.mxu0 0.0
        %268 = vmatprep.subr.mxu0 0.0
        %269 = vmatpush2.msra.mxu0 0.0
        %270 = vmatprep.subr.mxu0 0.0
        %271 = vmatpush2.msra.mxu0 0.0
        %272 = vmatprep.subr.mxu0 0.0
        %273 = vmatpush2.msra.mxu0 0.0
        %274 = vmatprep.subr.mxu0 0.0
        %275 = vmatpush2.msra.mxu0 0.0
        %276 = vmatprep.subr.mxu0 0.0
        %277 = vmatpush2.msra.mxu0 0.0
        %278 = vmatprep.subr.mxu0 0.0
        %279 = vmatpush2.msra.mxu0 0.0
        %280 = vmatprep.subr.mxu0 0.0
        %281 = vmatpush2.msra.mxu0 0.0
        %282 = vmatprep.subr.mxu0 0.0
        %283 = vmatpush2.msra.mxu0 0.0
        %284 = vmatprep.subr.mxu0 0.0
        %285 = vmatpush2.msra.mxu0 0.0
        %286 = vmatprep.subr.mxu0 0.0
        %287 = vmatpush2.msra.mxu0 0.0
        %288 = vmatprep.mubr.f32.mxu0 0.0
        %289 = vmatmul.mubr.f32.gmra.mxu0 %v179
        %v290 = vpop.f32.mrf.mxu0
        %v291 = vadd.f32 0.0, %v290
        %v292 = vpop.f32.mrf.mxu0
        %v293 = vadd.f32 0.0, %v292
        %294 = vmatprep.mubr.f32.mxu0 0.0
        %295 = vmatmul.mubr.f32.gmra.mxu0 %v180
        %v296 = vpop.f32.mrf.mxu0
        %v297 = vadd.f32 0.0, %v296
        %v298 = vpop.f32.mrf.mxu0
        %v299 = vadd.f32 0.0, %v298
        %300 = vmatprep.mubr.f32.mxu0 0.0
        %301 = vmatmul.mubr.f32.gmra.mxu0 %v181
        %v302 = vpop.f32.mrf.mxu0
        %v303 = vadd.f32 0.0, %v302
        %v304 = vpop.f32.mrf.mxu0
        %v305 = vadd.f32 0.0, %v304
        %306 = vmatprep.mubr.f32.mxu0 0.0
        %307 = vmatmul.mubr.f32.gmra.mxu0 %v182
        %v308 = vpop.f32.mrf.mxu0
        %v309 = vadd.f32 0.0, %v308
        %v310 = vpop.f32.mrf.mxu0
        %v311 = vadd.f32 0.0, %v310
        %312 = vmatprep.mubr.f32.mxu0 0.0
        %313 = vmatmul.mubr.f32.gmra.mxu0 %v183
        %v314 = vpop.f32.mrf.mxu0
        %v315 = vadd.f32 0.0, %v314
        %v316 = vpop.f32.mrf.mxu0
        %v317 = vadd.f32 0.0, %v316
        %318 = vmatprep.mubr.f32.mxu0 0.0
        %319 = vmatmul.mubr.f32.gmra.mxu0 %v184
        %v320 = vpop.f32.mrf.mxu0
        %v321 = vadd.f32 0.0, %v320
        %v322 = vpop.f32.mrf.mxu0
        %v323 = vadd.f32 0.0, %v322
        %324 = vmatprep.mubr.f32.mxu0 0.0
        %325 = vmatmul.mubr.f32.gmra.mxu0 %v185
        %v326 = vpop.f32.mrf.mxu0
        %v327 = vadd.f32 0.0, %v326
        %v328 = vpop.f32.mrf.mxu0
        %v329 = vadd.f32 0.0, %v328
        %330 = vmatprep.mubr.f32.mxu0 0.0
        %331 = vmatmul.mubr.f32.gmra.mxu0 %v186
        %v332 = vpop.f32.mrf.mxu0
        %v333 = vadd.f32 0.0, %v332
        %v334 = vpop.f32.mrf.mxu0
        %v335 = vadd.f32 0.0, %v334
        %336 = vmatprep.mubr.f32.mxu0 0.0
        %337 = vmatmul.mubr.f32.gmra.mxu0 %v187
        %v338 = vpop.f32.mrf.mxu0
        %v339 = vadd.f32 0.0, %v338
        %v340 = vpop.f32.mrf.mxu0
        %v341 = vadd.f32 0.0, %v340
        %342 = vmatprep.mubr.f32.mxu0 0.0
        %343 = vmatmul.mubr.f32.gmra.mxu0 %v188
        %v344 = vpop.f32.mrf.mxu0
        %v345 = vadd.f32 0.0, %v344
        %v346 = vpop.f32.mrf.mxu0
        %v347 = vadd.f32 0.0, %v346
        %348 = vmatprep.mubr.f32.mxu0 0.0
        %349 = vmatmul.mubr.f32.gmra.mxu0 %v189
        %v350 = vpop.f32.mrf.mxu0
        %v351 = vadd.f32 0.0, %v350
        %v352 = vpop.f32.mrf.mxu0
        %v353 = vadd.f32 0.0, %v352
        %354 = vmatprep.mubr.f32.mxu0 0.0
        %355 = vmatmul.mubr.f32.gmra.mxu0 %v190
        %v356 = vpop.f32.mrf.mxu0
        %v357 = vadd.f32 0.0, %v356
        %v358 = vpop.f32.mrf.mxu0
        %v359 = vadd.f32 0.0, %v358
        %360 = vmatprep.mubr.f32.mxu0 0.0
        %361 = vmatmul.mubr.f32.gmra.mxu0 %v191
        %v362 = vpop.f32.mrf.mxu0
        %v363 = vadd.f32 0.0, %v362
        %v364 = vpop.f32.mrf.mxu0
        %v365 = vadd.f32 0.0, %v364
        %366 = vdwg.mxu0
        %367 = vst [vmem:[%s176] sm:$0xff] %v291
        %368 = vst [vmem:[%s176 + $0x8] sm:$0xff] %v293
        %369 = vst [vmem:[%s176 + $0x10] sm:$0xff] %v297
        %370 = vst [vmem:[%s176 + $0x18] sm:$0xff] %v299
        %371 = vst [vmem:[%s176 + $0x20] sm:$0xff] %v303
        %372 = vst [vmem:[%s176 + $0x28] sm:$0xff] %v305
        %373 = vst [vmem:[%s176 + $0x30] sm:$0xff] %v309
        %374 = vst [vmem:[%s176 + $0x38] sm:$0xff] %v311
        %375 = vst [vmem:[%s176 + $0x40] sm:$0xff] %v315
        %376 = vst [vmem:[%s176 + $0x48] sm:$0xff] %v317
        %377 = vst [vmem:[%s176 + $0x50] sm:$0xff] %v321
        %378 = vst [vmem:[%s176 + $0x58] sm:$0xff] %v323
        %379 = vst [vmem:[%s176 + $0x60] sm:$0xff] %v327
        %380 = vst [vmem:[%s176 + $0x68] sm:$0xff] %v329
        %381 = vst [vmem:[%s176 + $0x70] sm:$0xff] %v333
        %382 = vst [vmem:[%s176 + $0x78] sm:$0xff] %v335
        %383 = vst [vmem:[%s176 + $0x80] sm:$0xff] %v339
        %384 = vst [vmem:[%s176 + $0x88] sm:$0xff] %v341
        %385 = vst [vmem:[%s176 + $0x90] sm:$0xff] %v345
        %386 = vst [vmem:[%s176 + $0x98] sm:$0xff] %v347
        %387 = vst [vmem:[%s176 + $0xa0] sm:$0xff] %v351
        %388 = vst [vmem:[%s176 + $0xa8] sm:$0xff] %v353
        %389 = vst [vmem:[%s176 + $0xb0] sm:$0xff] %v357
        %390 = vst [vmem:[%s176 + $0xb8] sm:$0xff] %v359
        %391 = vst [vmem:[%s176 + $0xc0] sm:$0xff] %v363
        %392 = vst [vmem:[%s176 + $0xc8] sm:$0xff] %v365
        %s393 = sand.u32 %s75, 1
        %s394 = scalar_lea.sflag [#allocation4], %s393
        %s395 = sand.u32 %s75, 1
        %s396 = smul.addr %s395, 208
        %s397 = scalar_lea.vmem [#allocation7], %s396
        // Predicated region
        $region37: #{tpu_custom_call.1} parent=27 // pred_check
          %p398 = pneg %p85
        $region38: #{tpu_custom_call.1} parent=27 // pred_check_branch
          %400 = sbr.rel (%p398) target = $region40
        $region39: #{tpu_custom_call.1} parent=27 // pred_region
          %s401 = smul.u32 13, %s20
          %s403 = ssub.s32 3328, 3328
          %404 = vsyncadd %s394, %s403
          %s405 = smul.addr %s401, 2
          %s406 = smul.addr %s405, 128
          %s407 = scalar_lea.hbm %s2, %s406
          %s408 = sshll.u32 %s397, 4
          %s409 = int_to_ptr.vmem [resolvable:$true] %s408
          %414 = dma.vmem_to_hbm [thread:$0]  %s409, 3328, %s407, %s394, 256, 256, 16
        $region40: #{tpu_custom_call.1} parent=27 // pred_fallthru
          _
      $region28: #{tpu_custom_call.1} parent=5 // pred_fallthru
        _
      %p415 = scmp.le.s32.totalorder 2, %s15
      // Predicated region
      $region41: #{tpu_custom_call.1} parent=5 // pred_check
        %p416 = pneg %p415
      $region42: #{tpu_custom_call.1} parent=5 // pred_check_branch
        %418 = sbr.rel (%p416) target = $region44
      $region43: #{tpu_custom_call.1} parent=5 // pred_region
        %s419 = ssub.s32 %s15, 2
        // Predicated region
        $region45: #{tpu_custom_call.1} parent=43 // pred_check
          %p420 = pneg %p91
        $region46: #{tpu_custom_call.1} parent=43 // pred_check_branch
          %422 = sbr.rel (%p420) target = $region48
        $region47: #{tpu_custom_call.1} parent=43 // pred_region
          %s423 = sand.u32 %s76, 1
          %s424 = scalar_lea.sflag [#allocation4], %s423
          %s425 = sand.u32 %s76, 1
          %s426 = smul.addr %s425, 208
          %s427 = scalar_lea.vmem [#allocation7], %s426
          %428 = dma.done %s424, 3328
        $region48: #{tpu_custom_call.1} parent=43 // pred_fallthru
          _
      $region44: #{tpu_custom_call.1} parent=5 // pred_fallthru
        _
    $region6: #{tpu_custom_call.1} parent=1 // loop_footer
      %s19 = sadd.s32 1, %s15
    $region7: #{tpu_custom_call.1} parent=1 // loop_footer_branch
      %14 = sbr.rel target = $region3
    $region8: #{tpu_custom_call.1} parent=1 // loop_exit
      _
    %429 = vsyncpa [#allocation3], 1
    %s430 = scalar_lea.sflag [#allocation3], 1
    %431 = vsyncpa %s430, 1
    %432 = vsyncpa [#allocation6], 1
    %433 = vsyncpa [#allocation4], 1
    %s434 = scalar_lea.sflag [#allocation4], 1
    %435 = vsyncpa %s434, 1

</llo_original>
